<compile_context>
chip_gen: v5e
topology: v5e:2x2
jax: 0.10.0
libtpu: 0.0.40
codegen_flags: <defaults>
</compile_context>

<pallas_src>
import jax
import jax.numpy as jnp
from jax.experimental import pallas as pl
from jax.experimental.pallas import tpu as pltpu

NEG_SLOPE = 0.01  # nn.LeakyReLU default negative_slope

_TB_MAX = 32 * 1024   # max batch-tile width in lanes (multiple of 128)
_MIN_GRID = 8         # prefer >= this many grid steps (megacore + pipelining)


def _leaky_relu(h):
    return jnp.where(h > 0, h, NEG_SLOPE * h)


def _choose_batch_tiling(batch):
    """Pick (tile_lanes, num_steps).

    tile_lanes is a multiple of 128 and <= _TB_MAX.  Prefer >= _MIN_GRID grid
    steps (v7x megacore sharding, DMA/compute overlap) but only when the extra
    batch padding that causes stays bounded (~<10%).
    """
    chunks = pl.cdiv(batch, 128)          # 128-lane chunks covering the batch
    max_chunks = _TB_MAX // 128
    steps = pl.cdiv(chunks, max_chunks)   # minimum steps for the VMEM bound
    preferred = min(_MIN_GRID, chunks)
    if preferred > steps:
        pad = 128 * preferred * pl.cdiv(chunks, preferred) - batch
        if pad <= max(128, batch // 10):  # keep padded (wasted) work bounded
            steps = preferred
    tile = 128 * pl.cdiv(chunks, steps)
    return tile, steps


def pack_params(params):
    """Pack the 4 (W, b) pairs into one (32, 9) f32 slab.

    Layer k occupies sublane rows [8k : 8k + out_k]: W in columns [0:in_k],
    bias in column 8.  Each layer stays inside a single 8-sublane tile, so the
    in-kernel static slices never cross a tile boundary.
    """
    slab = jnp.zeros((32, 9), jnp.float32)
    for k, (w, b) in enumerate(params):
        out_k, in_k = w.shape
        slab = slab.at[8 * k:8 * k + out_k, 0:in_k].set(w)
        slab = slab.at[8 * k:8 * k + out_k, 8].set(b)
    return slab


def mlp_abalone_kernel(x_ref, p_ref, o_ref):
    # x_ref: (8, TB) -- features on sublanes, batch on lanes (lane-dense).
    # p_ref: (32, 9) packed weights/biases, VMEM-resident across grid steps.
    h = x_ref[...]

    # Linear(8 -> 6) + LeakyReLU   (Dropout(0.2) is identity in eval mode)
    h = jnp.dot(p_ref[0:6, 0:8], h, preferred_element_type=jnp.float32)
    h = _leaky_relu(h + p_ref[0:6, 8:9])                          # (6, TB)

    # Linear(6 -> 4) + LeakyReLU
    h = jnp.dot(p_ref[8:12, 0:6], h, preferred_element_type=jnp.float32)
    h = _leaky_relu(h + p_ref[8:12, 8:9])                         # (4, TB)

    # Linear(4 -> 2) + LeakyReLU
    h = jnp.dot(p_ref[16:18, 0:4], h, preferred_element_type=jnp.float32)
    h = _leaky_relu(h + p_ref[16:18, 8:9])                        # (2, TB)

    # Linear(2 -> 1)
    h = jnp.dot(p_ref[24:25, 0:2], h, preferred_element_type=jnp.float32)
    h = h + p_ref[24:25, 8:9]
    o_ref[...] = h.astype(o_ref.dtype)                            # (1, TB) lane-dense


def mlp_abalone_forward(x, params, *, input_fusion=True):
    """x: (B, 8) float32.  Returns (B,) float32 (matches x.squeeze(1) in torch).

    params: list of (W, b) with W of shape (out, in) and b of shape (out,)
    for layers 8->6, 6->4, 4->2, 2->1.
    """
    B = x.shape[0]
    tb, steps = _choose_batch_tiling(B)
    b_pad = tb * steps

    # Layout plumbing: batch onto the lane axis, pad to whole tiles.  A single
    # transpose+pad producer; allow_input_fusion lets XLA fuse it into the
    # kernel's input read instead of materializing an extra HBM copy.
    x_t = jnp.pad(x.T, ((0, 0), (0, b_pad - B)))

    p = pack_params(params)

    flops = 2 * (8 * 6 + 6 * 4 + 4 * 2 + 2 * 1) * b_pad          # ~164 * b_pad
    bytes_accessed = 4 * (8 + 1) * b_pad + p.size * 4            # ~36 B / row

    out = pl.pallas_call(
        mlp_abalone_kernel,
        out_shape=jax.ShapeDtypeStruct((1, b_pad), jnp.float32),
        grid=(steps,),
        in_specs=[
            # x: tiled over batch (lane-dense blocks).
            pl.BlockSpec((8, tb), lambda i: (0, i)),
            # packed params: full-array block, constant index map -> stays
            # VMEM-resident across all grid steps.
            pl.BlockSpec(p.shape, lambda i: (0, 0)),
        ],
        out_specs=pl.BlockSpec((1, tb), lambda i: (0, i)),
        compiler_params=pltpu.CompilerParams(
            dimension_semantics=("parallel",),
            allow_input_fusion=[True, False] if input_fusion else None,
        ),
        cost_estimate=pl.CostEstimate(
            flops=flops, transcendentals=0, bytes_accessed=bytes_accessed),
    )(x_t, p)

    return out[0, :B]  # (B,) -- matches torch's squeeze(1)


def init_params(key):
    """Deterministic init matching nn.Linear shapes 8->6, 6->4, 4->2, 2->1.
    Weights stored (out, in) like PyTorch; biases stored (out,)."""
    dims = [(8, 6), (6, 4), (4, 2), (2, 1)]
    params = []
    for (fan_in, fan_out) in dims:
        key, kw, kb = jax.random.split(key, 3)
        bound = 1.0 / jnp.sqrt(fan_in)
        w = jax.random.uniform(kw, (fan_out, fan_in), jnp.float32, -bound, bound)
        b = jax.random.uniform(kb, (fan_out,), jnp.float32, -bound, bound)
        params.append((w, b))
    return params


def reference_forward(x, params):
    h = x
    for i, (w, b) in enumerate(params):
        h = h @ w.T + b
        if i < len(params) - 1:
            h = jnp.where(h > 0, h, NEG_SLOPE * h)
    return h[:, 0]


if __name__ == "__main__":
    key = jax.random.PRNGKey(0)
    kx, kp = jax.random.split(key)
    params = init_params(kp)

    # Two small batches: one single-tile (B=100, not a multiple of 128) and one
    # that exercises the multi-step grid / padded-last-tile path (B=1000 -> 8
    # grid steps of 128 lanes each).
    ok = True
    for B in (100, 1000):
        x = jax.random.normal(jax.random.fold_in(kx, B), (B, 8), dtype=jnp.float32)
        try:
            y = jax.block_until_ready(mlp_abalone_forward(x, params))
        except Exception:
            # Conservative fallback if this JAX/XLA build rejects input fusion.
            y = jax.block_until_ready(
                mlp_abalone_forward(x, params, input_fusion=False))
        y_ref = reference_forward(x, params)
        ok = ok and (y.shape == (B,)) and bool(
            jnp.allclose(y, y_ref, atol=1e-5, rtol=1e-5))

    assert ok
    print("KERNEL_OK")
</pallas_src>

<mosaic_0001>
module attributes {stable_mosaic.version = 11 : i64} {
  func.func @mlp_abalone_kernel(%arg0: i32, %arg1: memref<8x128xf32, #tpu.memory_space<vmem>>, %arg2: memref<32x9xf32, #tpu.memory_space<vmem>>, %arg3: memref<1x128xf32, #tpu.memory_space<vmem>>) attributes {dimension_semantics = [#tpu.dimension_semantics<parallel>], iteration_bounds = array<i64: 1>, scalar_prefetch = 0 : i64, scratch_operands = 0 : i64, tpu.core_type = #tpu.core_type<tc>, window_params = [{transform_indices = @transform_0, window_bounds = array<i64: 8, 128>}, {pipeline_mode = #tpu.pipeline_mode<synchronous>, transform_indices = @transform_1, window_bounds = array<i64: 32, 9>}, {transform_indices = @transform_2, window_bounds = array<i64: 1, 128>}]} {
    %c0 = arith.constant 0 : index
    %c0_0 = arith.constant 0 : index
    %0 = vector.load %arg1[%c0, %c0_0] : memref<8x128xf32, #tpu.memory_space<vmem>>, vector<8x128xf32>
    %c0_1 = arith.constant 0 : index
    %c0_2 = arith.constant 0 : index
    %1 = vector.load %arg2[%c0_1, %c0_2] : memref<32x9xf32, #tpu.memory_space<vmem>>, vector<6x8xf32>
    %cst = arith.constant dense<0.000000e+00> : vector<6x128xf32>
    %2 = tpu.matmul %1, %0, %cst {dimension_numbers = #tpu.dot_dimension_numbers<[1], [0], [0], [1], [0, 0, 1, 1], [], []>} : vector<6x8xf32>, vector<8x128xf32>, vector<6x128xf32> -> vector<6x128xf32>
    %c0_3 = arith.constant 0 : index
    %c8 = arith.constant 8 : index
    %3 = vector.load %arg2[%c0_3, %c8] : memref<32x9xf32, #tpu.memory_space<vmem>>, vector<6x1xf32>
    %4 = vector.broadcast %3 : vector<6x1xf32> to vector<6x128xf32>
    %5 = arith.addf %2, %4 : vector<6x128xf32>
    %cst_4 = arith.constant 0.000000e+00 : f32
    %6 = vector.broadcast %cst_4 : f32 to vector<6x128xf32>
    %7 = arith.cmpf ogt, %5, %6 : vector<6x128xf32>
    %cst_5 = arith.constant 0.00999999977 : f32
    %8 = vector.broadcast %cst_5 : f32 to vector<6x128xf32>
    %9 = arith.mulf %8, %5 : vector<6x128xf32>
    %10 = arith.select %7, %5, %9 : vector<6x128xi1>, vector<6x128xf32>
    %c8_6 = arith.constant 8 : index
    %c0_7 = arith.constant 0 : index
    %11 = vector.load %arg2[%c8_6, %c0_7] : memref<32x9xf32, #tpu.memory_space<vmem>>, vector<4x6xf32>
    %cst_8 = arith.constant dense<0.000000e+00> : vector<4x128xf32>
    %12 = tpu.matmul %11, %10, %cst_8 {dimension_numbers = #tpu.dot_dimension_numbers<[1], [0], [0], [1], [0, 0, 1, 1], [], []>} : vector<4x6xf32>, vector<6x128xf32>, vector<4x128xf32> -> vector<4x128xf32>
    %c8_9 = arith.constant 8 : index
    %c8_10 = arith.constant 8 : index
    %13 = vector.load %arg2[%c8_9, %c8_10] : memref<32x9xf32, #tpu.memory_space<vmem>>, vector<4x1xf32>
    %14 = vector.broadcast %13 : vector<4x1xf32> to vector<4x128xf32>
    %15 = arith.addf %12, %14 : vector<4x128xf32>
    %cst_11 = arith.constant 0.000000e+00 : f32
    %16 = vector.broadcast %cst_11 : f32 to vector<4x128xf32>
    %17 = arith.cmpf ogt, %15, %16 : vector<4x128xf32>
    %cst_12 = arith.constant 0.00999999977 : f32
    %18 = vector.broadcast %cst_12 : f32 to vector<4x128xf32>
    %19 = arith.mulf %18, %15 : vector<4x128xf32>
    %20 = arith.select %17, %15, %19 : vector<4x128xi1>, vector<4x128xf32>
    %c16 = arith.constant 16 : index
    %c0_13 = arith.constant 0 : index
    %21 = vector.load %arg2[%c16, %c0_13] : memref<32x9xf32, #tpu.memory_space<vmem>>, vector<2x4xf32>
    %cst_14 = arith.constant dense<0.000000e+00> : vector<2x128xf32>
    %22 = tpu.matmul %21, %20, %cst_14 {dimension_numbers = #tpu.dot_dimension_numbers<[1], [0], [0], [1], [0, 0, 1, 1], [], []>} : vector<2x4xf32>, vector<4x128xf32>, vector<2x128xf32> -> vector<2x128xf32>
    %c16_15 = arith.constant 16 : index
    %c8_16 = arith.constant 8 : index
    %23 = vector.load %arg2[%c16_15, %c8_16] : memref<32x9xf32, #tpu.memory_space<vmem>>, vector<2x1xf32>
    %24 = vector.broadcast %23 : vector<2x1xf32> to vector<2x128xf32>
    %25 = arith.addf %22, %24 : vector<2x128xf32>
    %cst_17 = arith.constant 0.000000e+00 : f32
    %26 = vector.broadcast %cst_17 : f32 to vector<2x128xf32>
    %27 = arith.cmpf ogt, %25, %26 : vector<2x128xf32>
    %cst_18 = arith.constant 0.00999999977 : f32
    %28 = vector.broadcast %cst_18 : f32 to vector<2x128xf32>
    %29 = arith.mulf %28, %25 : vector<2x128xf32>
    %30 = arith.select %27, %25, %29 : vector<2x128xi1>, vector<2x128xf32>
    %c24 = arith.constant 24 : index
    %c0_19 = arith.constant 0 : index
    %31 = vector.load %arg2[%c24, %c0_19] : memref<32x9xf32, #tpu.memory_space<vmem>>, vector<1x2xf32>
    %cst_20 = arith.constant dense<0.000000e+00> : vector<1x128xf32>
    %32 = tpu.matmul %31, %30, %cst_20 {dimension_numbers = #tpu.dot_dimension_numbers<[1], [0], [0], [1], [0, 0, 1, 1], [], []>} : vector<1x2xf32>, vector<2x128xf32>, vector<1x128xf32> -> vector<1x128xf32>
    %c24_21 = arith.constant 24 : index
    %c8_22 = arith.constant 8 : index
    %33 = vector.load %arg2[%c24_21, %c8_22] : memref<32x9xf32, #tpu.memory_space<vmem>>, vector<1x1xf32>
    %34 = vector.broadcast %33 : vector<1x1xf32> to vector<1x128xf32>
    %35 = arith.addf %32, %34 : vector<1x128xf32>
    %c0_23 = arith.constant 0 : index
    %c0_24 = arith.constant 0 : index
    %36 = vector.load %arg3[%c0_23, %c0_24] : memref<1x128xf32, #tpu.memory_space<vmem>>, vector<1x128xf32>
    tpu.vector_store %arg3[%c0_23, %c0_24], %35 {strides = array<i32>} : memref<1x128xf32, #tpu.memory_space<vmem>>, vector<1x128xf32>,
    return
  }
  func.func @transform_0(%arg0: i32) -> (i32, i32) {
    %c0_i32 = arith.constant 0 : i32
    %c0_i32_0 = arith.constant 0 : i32
    return %c0_i32, %arg0 : i32, i32
  }
  func.func @transform_1(%arg0: i32) -> (i32, i32) {
    %c0_i32 = arith.constant 0 : i32
    %c0_i32_0 = arith.constant 0 : i32
    %c0_i32_1 = arith.constant 0 : i32
    return %c0_i32, %c0_i32_0 : i32, i32
  }
  func.func @transform_2(%arg0: i32) -> (i32, i32) {
    %c0_i32 = arith.constant 0 : i32
    %c0_i32_0 = arith.constant 0 : i32
    return %c0_i32, %arg0 : i32, i32
  }
}

module attributes {stable_mosaic.version = 11 : i64} {
  func.func @mlp_abalone_kernel(%arg0: i32, %arg1: memref<8x128xf32, #tpu.memory_space<vmem>>, %arg2: memref<32x9xf32, #tpu.memory_space<vmem>>, %arg3: memref<1x128xf32, #tpu.memory_space<vmem>>) attributes {dimension_semantics = [#tpu.dimension_semantics<parallel>], iteration_bounds = array<i64: 1>, scalar_prefetch = 0 : i64, scratch_operands = 0 : i64, tpu.core_type = #tpu.core_type<tc>, window_params = [{transform_indices = @transform_0, window_bounds = array<i64: 8, 128>}, {pipeline_mode = #tpu.pipeline_mode<synchronous>, transform_indices = @transform_1, window_bounds = array<i64: 32, 9>}, {transform_indices = @transform_2, window_bounds = array<i64: 1, 128>}]} {
    %c0 = arith.constant 0 : index
    %c0_0 = arith.constant 0 : index
    %0 = vector.load %arg1[%c0, %c0_0] : memref<8x128xf32, #tpu.memory_space<vmem>>, vector<8x128xf32>
    %c0_1 = arith.constant 0 : index
    %c0_2 = arith.constant 0 : index
    %1 = vector.load %arg2[%c0_1, %c0_2] : memref<32x9xf32, #tpu.memory_space<vmem>>, vector<6x8xf32>
    %cst = arith.constant dense<0.000000e+00> : vector<6x128xf32>
    %2 = tpu.matmul %1, %0, %cst {dimension_numbers = #tpu.dot_dimension_numbers<[1], [0], [0], [1], [0, 0, 1, 1], [], []>} : vector<6x8xf32>, vector<8x128xf32>, vector<6x128xf32> -> vector<6x128xf32>
    %c0_3 = arith.constant 0 : index
    %c8 = arith.constant 8 : index
    %3 = vector.load %arg2[%c0_3, %c8] : memref<32x9xf32, #tpu.memory_space<vmem>>, vector<6x1xf32>
    %4 = vector.broadcast %3 : vector<6x1xf32> to vector<6x128xf32>
    %5 = arith.addf %2, %4 : vector<6x128xf32>
    %cst_4 = arith.constant 0.000000e+00 : f32
    %6 = vector.broadcast %cst_4 : f32 to vector<6x128xf32>
    %7 = arith.cmpf ogt, %5, %6 : vector<6x128xf32>
    %cst_5 = arith.constant 0.00999999977 : f32
    %8 = vector.broadcast %cst_5 : f32 to vector<6x128xf32>
    %9 = arith.mulf %8, %5 : vector<6x128xf32>
    %10 = arith.select %7, %5, %9 : vector<6x128xi1>, vector<6x128xf32>
    %c8_6 = arith.constant 8 : index
    %c0_7 = arith.constant 0 : index
    %11 = vector.load %arg2[%c8_6, %c0_7] : memref<32x9xf32, #tpu.memory_space<vmem>>, vector<4x6xf32>
    %cst_8 = arith.constant dense<0.000000e+00> : vector<4x128xf32>
    %12 = tpu.matmul %11, %10, %cst_8 {dimension_numbers = #tpu.dot_dimension_numbers<[1], [0], [0], [1], [0, 0, 1, 1], [], []>} : vector<4x6xf32>, vector<6x128xf32>, vector<4x128xf32> -> vector<4x128xf32>
    %c8_9 = arith.constant 8 : index
    %c8_10 = arith.constant 8 : index
    %13 = vector.load %arg2[%c8_9, %c8_10] : memref<32x9xf32, #tpu.memory_space<vmem>>, vector<4x1xf32>
    %14 = vector.broadcast %13 : vector<4x1xf32> to vector<4x128xf32>
    %15 = arith.addf %12, %14 : vector<4x128xf32>
    %cst_11 = arith.constant 0.000000e+00 : f32
    %16 = vector.broadcast %cst_11 : f32 to vector<4x128xf32>
    %17 = arith.cmpf ogt, %15, %16 : vector<4x128xf32>
    %cst_12 = arith.constant 0.00999999977 : f32
    %18 = vector.broadcast %cst_12 : f32 to vector<4x128xf32>
    %19 = arith.mulf %18, %15 : vector<4x128xf32>
    %20 = arith.select %17, %15, %19 : vector<4x128xi1>, vector<4x128xf32>
    %c16 = arith.constant 16 : index
    %c0_13 = arith.constant 0 : index
    %21 = vector.load %arg2[%c16, %c0_13] : memref<32x9xf32, #tpu.memory_space<vmem>>, vector<2x4xf32>
    %cst_14 = arith.constant dense<0.000000e+00> : vector<2x128xf32>
    %22 = tpu.matmul %21, %20, %cst_14 {dimension_numbers = #tpu.dot_dimension_numbers<[1], [0], [0], [1], [0, 0, 1, 1], [], []>} : vector<2x4xf32>, vector<4x128xf32>, vector<2x128xf32> -> vector<2x128xf32>
    %c16_15 = arith.constant 16 : index
    %c8_16 = arith.constant 8 : index
    %23 = vector.load %arg2[%c16_15, %c8_16] : memref<32x9xf32, #tpu.memory_space<vmem>>, vector<2x1xf32>
    %24 = vector.broadcast %23 : vector<2x1xf32> to vector<2x128xf32>
    %25 = arith.addf %22, %24 : vector<2x128xf32>
    %cst_17 = arith.constant 0.000000e+00 : f32
    %26 = vector.broadcast %cst_17 : f32 to vector<2x128xf32>
    %27 = arith.cmpf ogt, %25, %26 : vector<2x128xf32>
    %cst_18 = arith.constant 0.00999999977 : f32
    %28 = vector.broadcast %cst_18 : f32 to vector<2x128xf32>
    %29 = arith.mulf %28, %25 : vector<2x128xf32>
    %30 = arith.select %27, %25, %29 : vector<2x128xi1>, vector<2x128xf32>
    %c24 = arith.constant 24 : index
    %c0_19 = arith.constant 0 : index
    %31 = vector.load %arg2[%c24, %c0_19] : memref<32x9xf32, #tpu.memory_space<vmem>>, vector<1x2xf32>
    %cst_20 = arith.constant dense<0.000000e+00> : vector<1x128xf32>
    %32 = tpu.matmul %31, %30, %cst_20 {dimension_numbers = #tpu.dot_dimension_numbers<[1], [0], [0], [1], [0, 0, 1, 1], [], []>} : vector<1x2xf32>, vector<2x128xf32>, vector<1x128xf32> -> vector<1x128xf32>
    %c24_21 = arith.constant 24 : index
    %c8_22 = arith.constant 8 : index
    %33 = vector.load %arg2[%c24_21, %c8_22] : memref<32x9xf32, #tpu.memory_space<vmem>>, vector<1x1xf32>
    %34 = vector.broadcast %33 : vector<1x1xf32> to vector<1x128xf32>
    %35 = arith.addf %32, %34 : vector<1x128xf32>
    %c0_23 = arith.constant 0 : index
    %c0_24 = arith.constant 0 : index
    %36 = vector.load %arg3[%c0_23, %c0_24] : memref<1x128xf32, #tpu.memory_space<vmem>>, vector<1x128xf32>
    tpu.vector_store %arg3[%c0_23, %c0_24], %35 {strides = array<i32>} : memref<1x128xf32, #tpu.memory_space<vmem>>, vector<1x128xf32>,
    return
  }
  func.func @transform_0(%arg0: i32) -> (i32, i32) {
    %c0_i32 = arith.constant 0 : i32
    %c0_i32_0 = arith.constant 0 : i32
    return %c0_i32, %arg0 : i32, i32
  }
  func.func @transform_1(%arg0: i32) -> (i32, i32) {
    %c0_i32 = arith.constant 0 : i32
    %c0_i32_0 = arith.constant 0 : i32
    %c0_i32_1 = arith.constant 0 : i32
    return %c0_i32, %c0_i32_0 : i32, i32
  }
  func.func @transform_2(%arg0: i32) -> (i32, i32) {
    %c0_i32 = arith.constant 0 : i32
    %c0_i32_0 = arith.constant 0 : i32
    return %c0_i32, %arg0 : i32, i32
  }
}

</mosaic_0001>

<llo_original>
// kernel: tpu_custom_call.1
$region0: #{tpu_custom_call.1}
  #allocation0 [shape = 'u32[]', space=smem, size = 0x4, offset = 0x4, fixed_abs, tag = 'smem constant byte address 0x4 - core index']
  #allocation1 [shape = 'u32[72,128]{1,0:T(1,128)}', space=vmem, size = 0x9000, scoped, tag = 'internal scratch']
  %s0 = inlined_call_operand.vmem [shape: f32[8,128], index: 0, kind: input, shape index: {}]
  %s1 = inlined_call_operand.vmem [shape: f32[32,9], index: 1, kind: input, shape index: {}]
  %s2 = inlined_call_operand.hbm [shape: f32[1,128], index: 2, kind: output, shape index: {}]
  %s3 = sld [smem:[#allocation0]]
  $region18: #{tpu_custom_call.1} parent=0
    _
  %s5 = ssub.s32 1, %s3
  %s6 = scalar_select 0, %s5, %s3
  $region1: #{tpu_custom_call.1} parent=0
    #allocation2 [shape = 'u8[512]{0}', space=vmem, size = 0x400, scoped, tag = 'output window, operand 0, single buffered']
    #allocation3 [shape = 's32[1]{0}', space=sflag, size = 0x4, scoped, tag = 'scoped memory for tpu_custom_call.1']
    %7 = vsyncpa [#allocation3], 0
    // Predicated region
    $region2: #{tpu_custom_call.1} parent=1 // pred_check
      _
    $region3: #{tpu_custom_call.1} parent=1 // pred_check_branch
      %9 = sbr.rel (0) target = $region5
    $region4: #{tpu_custom_call.1} parent=1 // pred_region
      _
    $region5: #{tpu_custom_call.1} parent=1 // pred_fallthru
      _
    // Predicated region
    $region6: #{tpu_custom_call.1} parent=1 // pred_check
      _
    $region7: #{tpu_custom_call.1} parent=1 // pred_check_branch
      %11 = sbr.rel (0) target = $region9
    $region8: #{tpu_custom_call.1} parent=1 // pred_region
      _
    $region9: #{tpu_custom_call.1} parent=1 // pred_fallthru
      _
    %v12 = vld [vmem:[%s0] sm:$0xff]
    %v13 = vld [vmem:[%s1] sm:$0x3f]
    %15 = vset.pattern.permute.xlu0 8
    %16 = vperm.xlu0 %15, %v13
    %v17 = vpop.permute.xlu0 %16
    %vm19 = vcmask 64512
    %v20 = vsel %vm19, %v13, 0
    %22 = vmatpush.msra.mxu0 0.0
    %23 = vmatpush.msra.mxu0 0.0
    %24 = vmatpush.msra.mxu0 0.0
    %25 = vmatpush.msra.mxu0 0.0
    %26 = vmatpush.msra.mxu0 0.0
    %27 = vmatpush.msra.mxu0 0.0
    %28 = vmatpush.msra.mxu0 0.0
    %29 = vmatpush.msra.mxu0 0.0
    %30 = vmatpush.msra.mxu0 0.0
    %31 = vmatpush.msra.mxu0 0.0
    %32 = vmatpush.msra.mxu0 0.0
    %33 = vmatpush.msra.mxu0 0.0
    %34 = vmatpush.msra.mxu0 0.0
    %35 = vmatpush.msra.mxu0 0.0
    %36 = vmatpush.msra.mxu0 0.0
    %37 = vmatpush.msra.mxu0 %v12
    %38 = vmatmul.f32.gmra.mxu0 %v20
    %v39 = vpop.f32.mrf.mxu0
    %v40 = vadd.f32 %v17, %v39
    %41 = vdwg.mxu0
    %vm42 = vcmp.gt.f32.partialorder %v40, 0.0
    %v43 = vmul.f32 %v40, 0.01
    %v44 = vsel %vm42, %v40, %v43
    %v45 = vld [vmem:[%s1 + $0x8] sm:$0xf]
    %47 = vset.pattern.permute.xlu0 8
    %48 = vperm.xlu0 %47, %v45
    %v49 = vpop.permute.xlu0 %48
    %vm51 = vcmask 48128
    %v52 = vsel %vm51, %v45, 0
    %vm54 = vcmask 1045504
    %v56 = vsel %vm54, %v44, 0
    %58 = vmatpush.msra.mxu0 0.0
    %59 = vmatpush.msra.mxu0 0.0
    %60 = vmatpush.msra.mxu0 0.0
    %61 = vmatpush.msra.mxu0 0.0
    %62 = vmatpush.msra.mxu0 0.0
    %63 = vmatpush.msra.mxu0 0.0
    %64 = vmatpush.msra.mxu0 0.0
    %65 = vmatpush.msra.mxu0 0.0
    %66 = vmatpush.msra.mxu0 0.0
    %67 = vmatpush.msra.mxu0 0.0
    %68 = vmatpush.msra.mxu0 0.0
    %69 = vmatpush.msra.mxu0 0.0
    %70 = vmatpush.msra.mxu0 0.0
    %71 = vmatpush.msra.mxu0 0.0
    %72 = vmatpush.msra.mxu0 0.0
    %73 = vmatpush.msra.mxu0 %v56
    %74 = vmatmul.f32.gmra.mxu0 %v52
    %v75 = vpop.f32.mrf.mxu0
    %v76 = vadd.f32 %v49, %v75
    %77 = vdwg.mxu0
    %vm78 = vcmp.gt.f32.partialorder %v76, 0.0
    %v79 = vmul.f32 %v76, 0.01
    %v80 = vsel %vm78, %v76, %v79
    %v81 = vld [vmem:[%s1 + $0x10] sm:$0x3]
    %83 = vset.pattern.permute.xlu0 8
    %84 = vperm.xlu0 %83, %v81
    %v85 = vpop.permute.xlu0 %84
    %vm87 = vcmask 31744
    %v88 = vsel %vm87, %v81, 0
    %vm90 = vcmask 1043456
    %v92 = vsel %vm90, %v80, 0
    %94 = vmatpush.msra.mxu0 0.0
    %95 = vmatpush.msra.mxu0 0.0
    %96 = vmatpush.msra.mxu0 0.0
    %97 = vmatpush.msra.mxu0 0.0
    %98 = vmatpush.msra.mxu0 0.0
    %99 = vmatpush.msra.mxu0 0.0
    %100 = vmatpush.msra.mxu0 0.0
    %101 = vmatpush.msra.mxu0 0.0
    %102 = vmatpush.msra.mxu0 0.0
    %103 = vmatpush.msra.mxu0 0.0
    %104 = vmatpush.msra.mxu0 0.0
    %105 = vmatpush.msra.mxu0 0.0
    %106 = vmatpush.msra.mxu0 0.0
    %107 = vmatpush.msra.mxu0 0.0
    %108 = vmatpush.msra.mxu0 0.0
    %109 = vmatpush.msra.mxu0 %v92
    %110 = vmatmul.f32.gmra.mxu0 %v88
    %v111 = vpop.f32.mrf.mxu0
    %v112 = vadd.f32 %v85, %v111
    %113 = vdwg.mxu0
    %vm114 = vcmp.gt.f32.partialorder %v112, 0.0
    %v115 = vmul.f32 %v112, 0.01
    %v116 = vsel %vm114, %v112, %v115
    %v117 = vld [vmem:[%s1 + $0x18] sm:$0x1]
    %119 = vset.pattern.permute.xlu0 8
    %120 = vperm.xlu0 %119, %v117
    %v121 = vpop.permute.xlu0 %120
    %vm123 = vcmask 15360
    %v124 = vsel %vm123, %v117, 0
    %vm126 = vcmask 1041408
    %v128 = vsel %vm126, %v116, 0
    %130 = vmatpush.msra.mxu0 0.0
    %131 = vmatpush.msra.mxu0 0.0
    %132 = vmatpush.msra.mxu0 0.0
    %133 = vmatpush.msra.mxu0 0.0
    %134 = vmatpush.msra.mxu0 0.0
    %135 = vmatpush.msra.mxu0 0.0
    %136 = vmatpush.msra.mxu0 0.0
    %137 = vmatpush.msra.mxu0 0.0
    %138 = vmatpush.msra.mxu0 0.0
    %139 = vmatpush.msra.mxu0 0.0
    %140 = vmatpush.msra.mxu0 0.0
    %141 = vmatpush.msra.mxu0 0.0
    %142 = vmatpush.msra.mxu0 0.0
    %143 = vmatpush.msra.mxu0 0.0
    %144 = vmatpush.msra.mxu0 0.0
    %145 = vmatpush.msra.mxu0 %v128
    %146 = vmatmul.f32.gmra.mxu0 %v124
    %v147 = vpop.f32.mrf.mxu0
    %v148 = vadd.f32 %v121, %v147
    %149 = vdwg.mxu0
    %150 = vst [vmem:[#allocation2] sm:$0x1] %v148
    // Predicated region
    $region10: #{tpu_custom_call.1} parent=1 // pred_check
      _
    $region11: #{tpu_custom_call.1} parent=1 // pred_check_branch
      %152 = sbr.rel (0) target = $region13
    $region12: #{tpu_custom_call.1} parent=1 // pred_region
      %154 = vsyncadd [#allocation3], 0
      %s156 = sshll.u32 [#allocation2], 4
      %s157 = int_to_ptr.vmem [resolvable:$true] %s156
      %s158 = sshll.u32 %s2, 4
      %s159 = int_to_ptr.hbm [resolvable:$true] %s158
      %161 = dma.vmem_to_hbm [thread:$0]  %s157, 16, %s159, [#allocation3]
    $region13: #{tpu_custom_call.1} parent=1 // pred_fallthru
      _
    // Predicated region
    $region14: #{tpu_custom_call.1} parent=1 // pred_check
      _
    $region15: #{tpu_custom_call.1} parent=1 // pred_check_branch
      %163 = sbr.rel (0) target = $region17
    $region16: #{tpu_custom_call.1} parent=1 // pred_region
      %165 = dma.done [#allocation3], 16
    $region17: #{tpu_custom_call.1} parent=1 // pred_fallthru
      _
    %166 = vsyncpa [#allocation3], 1

// kernel: tpu_custom_call.1
$region0: #{tpu_custom_call.1}
  #allocation0 [shape = 'u32[]', space=smem, size = 0x4, offset = 0x4, fixed_abs, tag = 'smem constant byte address 0x4 - core index']
  #allocation1 [shape = 'u32[72,128]{1,0:T(1,128)}', space=vmem, size = 0x9000, scoped, tag = 'internal scratch']
  %s0 = inlined_call_operand.vmem [shape: f32[8,128], index: 0, kind: input, shape index: {}]
  %s1 = inlined_call_operand.vmem [shape: f32[32,9], index: 1, kind: input, shape index: {}]
  %s2 = inlined_call_operand.hbm [shape: f32[1,128], index: 2, kind: output, shape index: {}]
  %s3 = sld [smem:[#allocation0]]
  $region18: #{tpu_custom_call.1} parent=0
    _
  %s5 = ssub.s32 1, %s3
  %s6 = scalar_select 0, %s5, %s3
  $region1: #{tpu_custom_call.1} parent=0
    #allocation2 [shape = 'u8[512]{0}', space=vmem, size = 0x400, scoped, tag = 'output window, operand 0, single buffered']
    #allocation3 [shape = 's32[1]{0}', space=sflag, size = 0x4, scoped, tag = 'scoped memory for tpu_custom_call.1']
    %7 = vsyncpa [#allocation3], 0
    // Predicated region
    $region2: #{tpu_custom_call.1} parent=1 // pred_check
      _
    $region3: #{tpu_custom_call.1} parent=1 // pred_check_branch
      %9 = sbr.rel (0) target = $region5
    $region4: #{tpu_custom_call.1} parent=1 // pred_region
      _
    $region5: #{tpu_custom_call.1} parent=1 // pred_fallthru
      _
    // Predicated region
    $region6: #{tpu_custom_call.1} parent=1 // pred_check
      _
    $region7: #{tpu_custom_call.1} parent=1 // pred_check_branch
      %11 = sbr.rel (0) target = $region9
    $region8: #{tpu_custom_call.1} parent=1 // pred_region
      _
    $region9: #{tpu_custom_call.1} parent=1 // pred_fallthru
      _
    %v12 = vld [vmem:[%s0] sm:$0xff]
    %v13 = vld [vmem:[%s1] sm:$0x3f]
    %15 = vset.pattern.permute.xlu0 8
    %16 = vperm.xlu0 %15, %v13
    %v17 = vpop.permute.xlu0 %16
    %vm19 = vcmask 64512
    %v20 = vsel %vm19, %v13, 0
    %22 = vmatpush.msra.mxu0 0.0
    %23 = vmatpush.msra.mxu0 0.0
    %24 = vmatpush.msra.mxu0 0.0
    %25 = vmatpush.msra.mxu0 0.0
    %26 = vmatpush.msra.mxu0 0.0
    %27 = vmatpush.msra.mxu0 0.0
    %28 = vmatpush.msra.mxu0 0.0
    %29 = vmatpush.msra.mxu0 0.0
    %30 = vmatpush.msra.mxu0 0.0
    %31 = vmatpush.msra.mxu0 0.0
    %32 = vmatpush.msra.mxu0 0.0
    %33 = vmatpush.msra.mxu0 0.0
    %34 = vmatpush.msra.mxu0 0.0
    %35 = vmatpush.msra.mxu0 0.0
    %36 = vmatpush.msra.mxu0 0.0
    %37 = vmatpush.msra.mxu0 %v12
    %38 = vmatmul.f32.gmra.mxu0 %v20
    %v39 = vpop.f32.mrf.mxu0
    %v40 = vadd.f32 %v17, %v39
    %41 = vdwg.mxu0
    %vm42 = vcmp.gt.f32.partialorder %v40, 0.0
    %v43 = vmul.f32 %v40, 0.01
    %v44 = vsel %vm42, %v40, %v43
    %v45 = vld [vmem:[%s1 + $0x8] sm:$0xf]
    %47 = vset.pattern.permute.xlu0 8
    %48 = vperm.xlu0 %47, %v45
    %v49 = vpop.permute.xlu0 %48
    %vm51 = vcmask 48128
    %v52 = vsel %vm51, %v45, 0
    %vm54 = vcmask 1045504
    %v56 = vsel %vm54, %v44, 0
    %58 = vmatpush.msra.mxu0 0.0
    %59 = vmatpush.msra.mxu0 0.0
    %60 = vmatpush.msra.mxu0 0.0
    %61 = vmatpush.msra.mxu0 0.0
    %62 = vmatpush.msra.mxu0 0.0
    %63 = vmatpush.msra.mxu0 0.0
    %64 = vmatpush.msra.mxu0 0.0
    %65 = vmatpush.msra.mxu0 0.0
    %66 = vmatpush.msra.mxu0 0.0
    %67 = vmatpush.msra.mxu0 0.0
    %68 = vmatpush.msra.mxu0 0.0
    %69 = vmatpush.msra.mxu0 0.0
    %70 = vmatpush.msra.mxu0 0.0
    %71 = vmatpush.msra.mxu0 0.0
    %72 = vmatpush.msra.mxu0 0.0
    %73 = vmatpush.msra.mxu0 %v56
    %74 = vmatmul.f32.gmra.mxu0 %v52
    %v75 = vpop.f32.mrf.mxu0
    %v76 = vadd.f32 %v49, %v75
    %77 = vdwg.mxu0
    %vm78 = vcmp.gt.f32.partialorder %v76, 0.0
    %v79 = vmul.f32 %v76, 0.01
    %v80 = vsel %vm78, %v76, %v79
    %v81 = vld [vmem:[%s1 + $0x10] sm:$0x3]
    %83 = vset.pattern.permute.xlu0 8
    %84 = vperm.xlu0 %83, %v81
    %v85 = vpop.permute.xlu0 %84
    %vm87 = vcmask 31744
    %v88 = vsel %vm87, %v81, 0
    %vm90 = vcmask 1043456
    %v92 = vsel %vm90, %v80, 0
    %94 = vmatpush.msra.mxu0 0.0
    %95 = vmatpush.msra.mxu0 0.0
    %96 = vmatpush.msra.mxu0 0.0
    %97 = vmatpush.msra.mxu0 0.0
    %98 = vmatpush.msra.mxu0 0.0
    %99 = vmatpush.msra.mxu0 0.0
    %100 = vmatpush.msra.mxu0 0.0
    %101 = vmatpush.msra.mxu0 0.0
    %102 = vmatpush.msra.mxu0 0.0
    %103 = vmatpush.msra.mxu0 0.0
    %104 = vmatpush.msra.mxu0 0.0
    %105 = vmatpush.msra.mxu0 0.0
    %106 = vmatpush.msra.mxu0 0.0
    %107 = vmatpush.msra.mxu0 0.0
    %108 = vmatpush.msra.mxu0 0.0
    %109 = vmatpush.msra.mxu0 %v92
    %110 = vmatmul.f32.gmra.mxu0 %v88
    %v111 = vpop.f32.mrf.mxu0
    %v112 = vadd.f32 %v85, %v111
    %113 = vdwg.mxu0
    %vm114 = vcmp.gt.f32.partialorder %v112, 0.0
    %v115 = vmul.f32 %v112, 0.01
    %v116 = vsel %vm114, %v112, %v115
    %v117 = vld [vmem:[%s1 + $0x18] sm:$0x1]
    %119 = vset.pattern.permute.xlu0 8
    %120 = vperm.xlu0 %119, %v117
    %v121 = vpop.permute.xlu0 %120
    %vm123 = vcmask 15360
    %v124 = vsel %vm123, %v117, 0
    %vm126 = vcmask 1041408
    %v128 = vsel %vm126, %v116, 0
    %130 = vmatpush.msra.mxu0 0.0
    %131 = vmatpush.msra.mxu0 0.0
    %132 = vmatpush.msra.mxu0 0.0
    %133 = vmatpush.msra.mxu0 0.0
    %134 = vmatpush.msra.mxu0 0.0
    %135 = vmatpush.msra.mxu0 0.0
    %136 = vmatpush.msra.mxu0 0.0
    %137 = vmatpush.msra.mxu0 0.0
    %138 = vmatpush.msra.mxu0 0.0
    %139 = vmatpush.msra.mxu0 0.0
    %140 = vmatpush.msra.mxu0 0.0
    %141 = vmatpush.msra.mxu0 0.0
    %142 = vmatpush.msra.mxu0 0.0
    %143 = vmatpush.msra.mxu0 0.0
    %144 = vmatpush.msra.mxu0 0.0
    %145 = vmatpush.msra.mxu0 %v128
    %146 = vmatmul.f32.gmra.mxu0 %v124
    %v147 = vpop.f32.mrf.mxu0
    %v148 = vadd.f32 %v121, %v147
    %149 = vdwg.mxu0
    %150 = vst [vmem:[#allocation2] sm:$0x1] %v148
    // Predicated region
    $region10: #{tpu_custom_call.1} parent=1 // pred_check
      _
    $region11: #{tpu_custom_call.1} parent=1 // pred_check_branch
      %152 = sbr.rel (0) target = $region13
    $region12: #{tpu_custom_call.1} parent=1 // pred_region
      %154 = vsyncadd [#allocation3], 0
      %s156 = sshll.u32 [#allocation2], 4
      %s157 = int_to_ptr.vmem [resolvable:$true] %s156
      %s158 = sshll.u32 %s2, 4
      %s159 = int_to_ptr.hbm [resolvable:$true] %s158
      %161 = dma.vmem_to_hbm [thread:$0]  %s157, 16, %s159, [#allocation3]
    $region13: #{tpu_custom_call.1} parent=1 // pred_fallthru
      _
    // Predicated region
    $region14: #{tpu_custom_call.1} parent=1 // pred_check
      _
    $region15: #{tpu_custom_call.1} parent=1 // pred_check_branch
      %163 = sbr.rel (0) target = $region17
    $region16: #{tpu_custom_call.1} parent=1 // pred_region
      %165 = dma.done [#allocation3], 16
    $region17: #{tpu_custom_call.1} parent=1 // pred_fallthru
      _
    %166 = vsyncpa [#allocation3], 1

</llo_original>
